<compile_context>
chip_gen: v7x
topology: tpu7x:2x2x1
jax: 0.10.0
libtpu: 0.0.40
codegen_flags: <defaults>
</compile_context>

<pallas_src>
import functools

import jax
import jax.numpy as jnp
from jax.experimental import pallas as pl
from jax.experimental.pallas import tpu as pltpu


# ----------------------------------------------------------------------------
# Fused bidirectional LSTM layer kernel (+ optional classification head)
# ----------------------------------------------------------------------------
def _bilstm_layer_kernel(*refs, with_head):
    if with_head:
        (x_ref, wih_ref, whh_ref, b_ref, wh_ref, bh_ref,
         out_ref, head_ref, h_scr, c_scr, xg_scr) = refs
    else:
        (x_ref, wih_ref, whh_ref, b_ref,
         out_ref, h_scr, c_scr, xg_scr) = refs

    B, H2 = h_scr.shape              # (B, 2H): [h_fwd | h_bwd]
    H = H2 // 2
    G = 4 * H                        # per-direction gate width
    TB = x_ref.shape[0]
    T = TB // B

    # ---- (1) input projection, hoisted out of the recurrence ------------------------------
    # One (T*B, D_in) x (D_in, 8H) matmul covers every time step and both directions.
    x_all = x_ref[...].astype(jnp.bfloat16)
    xg_scr[...] = (jnp.dot(x_all, wih_ref[...],
                           preferred_element_type=jnp.float32)
                   + b_ref[...])                                  # (T*B, 8H), f32

    # ---- (2) time recurrence ---------------------------------------------------------------
    h_scr[...] = jnp.zeros_like(h_scr)
    c_scr[...] = jnp.zeros_like(c_scr)
    whh = whh_ref[...]               # (2H, 8H) block-diagonal recurrent weight, bf16, resident

    def cell(g, c):                  # g: (B, 4H) f32 pre-activations [i,f,g,o]; c: (B, H) f32
        i = jax.nn.sigmoid(g[:, 0 * H:1 * H])
        f = jax.nn.sigmoid(g[:, 1 * H:2 * H])
        gg = jnp.tanh(g[:, 2 * H:3 * H])
        o = jax.nn.sigmoid(g[:, 3 * H:4 * H])
        c_new = f * c + i * gg
        return o * jnp.tanh(c_new), c_new

    @pl.loop(0, T)
    def _(t):
        row = pl.multiple_of(t * B, B)                # forward direction reads time t
        rev = pl.multiple_of((T - 1 - t) * B, B)      # backward direction reads time T-1-t
        # One recurrent matmul for both directions (block-diagonal weight, N = 8H).
        rec = jnp.dot(h_scr[...].astype(jnp.bfloat16), whh,
                      preferred_element_type=jnp.float32)          # (B, 8H) f32
        g_f = xg_scr[pl.ds(row, B), pl.ds(0, G)] + rec[:, :G]
        g_b = xg_scr[pl.ds(rev, B), pl.ds(G, G)] + rec[:, G:]
        c = c_scr[...]
        h_f, c_f = cell(g_f, c[:, :H])
        h_b, c_b = cell(g_b, c[:, H:])
        h_scr[...] = jnp.concatenate([h_f, h_b], axis=-1)
        c_scr[...] = jnp.concatenate([c_f, c_b], axis=-1)
        # output layout matches PyTorch: out[t] = concat(h_fwd(t), h_bwd(t))
        out_ref[pl.ds(row, B), pl.ds(0, H)] = h_f
        out_ref[pl.ds(rev, B), pl.ds(H, H)] = h_b

    # ---- (3) fused head (last layer only): sigmoid(Linear(ht[-1])) --------------------------
    if with_head:
        hb = h_scr[...][:, H:]                        # final hidden of the backward direction
        logits = jnp.dot(hb, wh_ref[...],
                         preferred_element_type=jnp.float32) + bh_ref[...]
        head_ref[...] = jax.nn.sigmoid(logits)


# ----------------------------------------------------------------------------
# Wrappers
# ----------------------------------------------------------------------------
def bilstm_layer(x2d, layer_p, *, batch, head=None):
    """Run one fused bidirectional LSTM layer.

    x2d: (T*B, D_in) time-major rows (row index = t*B + b), f32.
    Returns (out2d, probs): out2d (T*B, 2H) f32; probs (B, 1) f32 if `head` given else None.
    """
    TB, _ = x2d.shape
    H = layer_p["whh"].shape[0] // 2
    with_head = head is not None

    in_arrays = [x2d, layer_p["wih"], layer_p["whh"], layer_p["b"]]
    in_specs = [pl.BlockSpec(a.shape, lambda i, nd=a.ndim: (0,) * nd) for a in in_arrays]

    out_shapes = [jax.ShapeDtypeStruct((TB, 2 * H), jnp.float32)]
    out_specs = [pl.BlockSpec((TB, 2 * H), lambda i: (0, 0))]

    if with_head:
        head_w, head_b = head
        in_arrays += [head_w, head_b]
        in_specs += [pl.BlockSpec(head_w.shape, lambda i: (0, 0)),
                     pl.BlockSpec(head_b.shape, lambda i: (0, 0))]
        out_shapes.append(jax.ShapeDtypeStruct((batch, 1), jnp.float32))
        out_specs.append(pl.BlockSpec((batch, 1), lambda i: (0, 0)))

    kernel = functools.partial(_bilstm_layer_kernel, with_head=with_head)

    res = pl.pallas_call(
        kernel,
        out_shape=tuple(out_shapes),
        grid_spec=pltpu.PrefetchScalarGridSpec(
            num_scalar_prefetch=0,
            grid=(1,),
            in_specs=in_specs,
            out_specs=tuple(out_specs),
            scratch_shapes=[
                pltpu.VMEM((batch, 2 * H), jnp.float32),   # h carry [fwd | bwd]
                pltpu.VMEM((batch, 2 * H), jnp.float32),   # c carry [fwd | bwd]
                pltpu.VMEM((TB, 8 * H), jnp.float32),      # hoisted input-projection gates
            ]),
        compiler_params=pltpu.CompilerParams(
            dimension_semantics=("arbitrary",)),           # sequential recurrence
    )(*in_arrays)

    if with_head:
        return res[0], res[1]
    return res[0], None


def lstm_forward(params, sequences, lengths=None):
    del lengths  # the reference forward never packs sequences, so lengths is unused there too

    # Embedding gather (glue, plain JAX); Dropout -> identity (eval mode).
    emb = params["embedding"][sequences]                       # (B, T, E)
    B, T, _ = emb.shape
    B_pad = ((B + 7) // 8) * 8                                 # pad batch to sublane multiple
    x = jnp.transpose(emb, (1, 0, 2)).astype(jnp.float32)      # (T, B, E) time-major
    if B_pad != B:
        x = jnp.pad(x, ((0, 0), (0, B_pad - B), (0, 0)))
    x2d = x.reshape(T * B_pad, -1)                             # row index = t*B_pad + b

    n_layers = len(params["layers"])
    probs = None
    for li, lp in enumerate(params["layers"]):
        last = li == n_layers - 1
        head = (params["linear_w"], params["linear_b"]) if last else None
        x2d, p = bilstm_layer(x2d, lp, batch=B_pad, head=head)
        if last:
            probs = p
    return probs[:B]                                           # drop batch padding


# ----------------------------------------------------------------------------
# Parameter construction (PyTorch layout) + packing into the fused kernel layout
# ----------------------------------------------------------------------------
def pack_layer_params(fwd, bwd):
    """Combine PyTorch-layout (W_ih (4H,Din), W_hh (4H,H), b_ih, b_hh) for both directions
    into pre-transposed, pre-concatenated kernel weights (bf16 for the MXU)."""
    w_ih_f, w_hh_f, b_ih_f, b_hh_f = fwd
    w_ih_b, w_hh_b, b_ih_b, b_hh_b = bwd
    H = w_hh_f.shape[1]
    # (D_in, 8H): columns = [fwd gates i,f,g,o | bwd gates i,f,g,o]
    wih = jnp.concatenate([w_ih_f, w_ih_b], axis=0).T.astype(jnp.bfloat16)
    z = jnp.zeros((H, 4 * H), jnp.float32)
    whh = jnp.concatenate(
        [jnp.concatenate([w_hh_f.T, z], axis=1),      # h_fwd rows -> fwd gate columns
         jnp.concatenate([z, w_hh_b.T], axis=1)],     # h_bwd rows -> bwd gate columns
        axis=0).astype(jnp.bfloat16)                  # (2H, 8H) block-diagonal
    b = jnp.concatenate([b_ih_f + b_hh_f, b_ih_b + b_hh_b]).reshape(1, 8 * H)
    return {"wih": wih, "whh": whh, "b": b.astype(jnp.float32)}


def init_params(key, vocab, emb_dim, hidden, num_layers, padding_idx=0):
    n_keys = 1 + num_layers * 2 * 4 + 2
    keys = iter(jax.random.split(key, n_keys))

    # "pretrained" embeddings, padding row zeroed (padding_idx=0).
    emb = 0.1 * jax.random.normal(next(keys), (vocab, emb_dim), dtype=jnp.float32)
    emb = emb.at[padding_idx].set(0.0)

    bound = 1.0 / float(hidden) ** 0.5
    uni = lambda k, shape: jax.random.uniform(k, shape, jnp.float32, -bound, bound)

    layers = []
    for layer in range(num_layers):
        d_in = emb_dim if layer == 0 else 2 * hidden
        dirs = []
        for _ in range(2):  # fwd, bwd
            w_ih = uni(next(keys), (4 * hidden, d_in))
            w_hh = uni(next(keys), (4 * hidden, hidden))
            b_ih = uni(next(keys), (4 * hidden,))
            b_hh = uni(next(keys), (4 * hidden,))
            dirs.append((w_ih, w_hh, b_ih, b_hh))
        layers.append(pack_layer_params(dirs[0], dirs[1]))

    linear_w = uni(next(keys), (1, hidden)).T          # pre-transposed -> (H, 1)
    linear_b = uni(next(keys), (1, 1))

    return {"embedding": emb, "layers": layers,
            "linear_w": linear_w, "linear_b": linear_b}


# ----------------------------------------------------------------------------
if __name__ == "__main__":
    VOCAB = 50
    EMB_DIM = 32
    HIDDEN = 32
    NUM_LAYERS = 2
    BATCH = 2
    SEQ = 8

    root = jax.random.PRNGKey(0)
    k_params, k_seq = jax.random.split(root)

    params = init_params(k_params, VOCAB, EMB_DIM, HIDDEN, NUM_LAYERS, padding_idx=0)
    sequences = jax.random.randint(k_seq, (BATCH, SEQ), 1, VOCAB, dtype=jnp.int32)
    lengths = jnp.full((BATCH,), SEQ, dtype=jnp.int32)   # unused by forward (no packing)

    out = jax.jit(lstm_forward)(params, sequences, lengths)
    out = jax.block_until_ready(out)

    assert out.shape == (BATCH, 1), out.shape
    assert out.dtype == jnp.float32
    assert bool(jnp.all((out >= 0.0) & (out <= 1.0)))
    print("KERNEL_OK")
</pallas_src>

<mosaic_0001>
module attributes {stable_mosaic.version = 11 : i64} {
  func.func @_bilstm_layer_kernel(%arg0: i32, %arg1: memref<64x32xf32, #tpu.memory_space<vmem>>, %arg2: memref<32x256xbf16, #tpu.memory_space<vmem>>, %arg3: memref<64x256xbf16, #tpu.memory_space<vmem>>, %arg4: memref<1x256xf32, #tpu.memory_space<vmem>>, %arg5: memref<64x64xf32, #tpu.memory_space<vmem>>, %arg6: memref<8x64xf32, #tpu.memory_space<vmem>>, %arg7: memref<8x64xf32, #tpu.memory_space<vmem>>, %arg8: memref<64x256xf32, #tpu.memory_space<vmem>>) attributes {dimension_semantics = [#tpu.dimension_semantics<arbitrary>], iteration_bounds = array<i64: 1>, scalar_prefetch = 0 : i64, scratch_operands = 3 : i64, tpu.core_type = #tpu.core_type<tc>, window_params = [{pipeline_mode = #tpu.pipeline_mode<synchronous>, transform_indices = @transform_0, window_bounds = array<i64: 64, 32>}, {pipeline_mode = #tpu.pipeline_mode<synchronous>, transform_indices = @transform_1, window_bounds = array<i64: 32, 256>}, {pipeline_mode = #tpu.pipeline_mode<synchronous>, transform_indices = @transform_2, window_bounds = array<i64: 64, 256>}, {pipeline_mode = #tpu.pipeline_mode<synchronous>, transform_indices = @transform_3, window_bounds = array<i64: 1, 256>}, {pipeline_mode = #tpu.pipeline_mode<synchronous>, transform_indices = @transform_4, window_bounds = array<i64: 64, 64>}]} {
    %c0 = arith.constant 0 : index
    %c0_0 = arith.constant 0 : index
    %0 = vector.load %arg1[%c0, %c0_0] : memref<64x32xf32, #tpu.memory_space<vmem>>, vector<64x32xf32>
    %1 = arith.truncf %0 : vector<64x32xf32> to vector<64x32xbf16>
    %c0_1 = arith.constant 0 : index
    %c0_2 = arith.constant 0 : index
    %2 = vector.load %arg2[%c0_1, %c0_2] : memref<32x256xbf16, #tpu.memory_space<vmem>>, vector<32x256xbf16>
    %cst = arith.constant dense<0.000000e+00> : vector<64x256xf32>
    %3 = tpu.matmul %1, %2, %cst {dimension_numbers = #tpu.dot_dimension_numbers<[1], [0], [0], [1], [0, 0, 1, 1], [], []>} : vector<64x32xbf16>, vector<32x256xbf16>, vector<64x256xf32> -> vector<64x256xf32>
    %c0_3 = arith.constant 0 : index
    %c0_4 = arith.constant 0 : index
    %4 = vector.load %arg4[%c0_3, %c0_4] : memref<1x256xf32, #tpu.memory_space<vmem>>, vector<1x256xf32>
    %5 = vector.broadcast %4 : vector<1x256xf32> to vector<64x256xf32>
    %6 = arith.addf %3, %5 : vector<64x256xf32>
    %c0_5 = arith.constant 0 : index
    %c0_6 = arith.constant 0 : index
    %7 = vector.load %arg8[%c0_5, %c0_6] : memref<64x256xf32, #tpu.memory_space<vmem>>, vector<64x256xf32>
    tpu.vector_store %arg8[%c0_5, %c0_6], %6 {strides = array<i32>} : memref<64x256xf32, #tpu.memory_space<vmem>>, vector<64x256xf32>,
    %cst_7 = arith.constant 0.000000e+00 : f32
    %8 = vector.broadcast %cst_7 : f32 to vector<8x64xf32>
    %c0_8 = arith.constant 0 : index
    %c0_9 = arith.constant 0 : index
    %9 = vector.load %arg6[%c0_8, %c0_9] : memref<8x64xf32, #tpu.memory_space<vmem>>, vector<8x64xf32>
    tpu.vector_store %arg6[%c0_8, %c0_9], %8 {strides = array<i32>} : memref<8x64xf32, #tpu.memory_space<vmem>>, vector<8x64xf32>,
    %cst_10 = arith.constant 0.000000e+00 : f32
    %10 = vector.broadcast %cst_10 : f32 to vector<8x64xf32>
    %c0_11 = arith.constant 0 : index
    %c0_12 = arith.constant 0 : index
    %11 = vector.load %arg7[%c0_11, %c0_12] : memref<8x64xf32, #tpu.memory_space<vmem>>, vector<8x64xf32>
    tpu.vector_store %arg7[%c0_11, %c0_12], %10 {strides = array<i32>} : memref<8x64xf32, #tpu.memory_space<vmem>>, vector<8x64xf32>,
    %c0_13 = arith.constant 0 : index
    %c0_14 = arith.constant 0 : index
    %12 = vector.load %arg3[%c0_13, %c0_14] : memref<64x256xbf16, #tpu.memory_space<vmem>>, vector<64x256xbf16>
    %c0_i32 = arith.constant 0 : i32
    %c8_i32 = arith.constant 8 : i32
    %13 = arith.addi %c0_i32, %c8_i32 : i32
    %c1_i32 = arith.constant 1 : i32
    scf.for %arg9 = %c0_i32 to %13 step %c1_i32  : i32 {
      %c1_i32_16 = arith.constant 1 : i32
      %14 = arith.muli %arg9, %c1_i32_16 : i32
      %c0_i32_17 = arith.constant 0 : i32
      %15 = arith.addi %c0_i32_17, %14 : i32
      %c8_i32_18 = arith.constant 8 : i32
      %16 = arith.muli %15, %c8_i32_18 : i32
      %17 = tpu.assume_multiple %16, 8 : i32
      %c7_i32 = arith.constant 7 : i32
      %18 = arith.subi %c7_i32, %15 : i32
      %c8_i32_19 = arith.constant 8 : i32
      %19 = arith.muli %18, %c8_i32_19 : i32
      %20 = tpu.assume_multiple %19, 8 : i32
      %c0_20 = arith.constant 0 : index
      %c0_21 = arith.constant 0 : index
      %21 = vector.load %arg6[%c0_20, %c0_21] : memref<8x64xf32, #tpu.memory_space<vmem>>, vector<8x64xf32>
      %22 = arith.truncf %21 : vector<8x64xf32> to vector<8x64xbf16>
      %cst_22 = arith.constant dense<0.000000e+00> : vector<8x256xf32>
      %23 = tpu.matmul %22, %12, %cst_22 {dimension_numbers = #tpu.dot_dimension_numbers<[1], [0], [0], [1], [0, 0, 1, 1], [], []>} : vector<8x64xbf16>, vector<64x256xbf16>, vector<8x256xf32> -> vector<8x256xf32>
      %24 = arith.index_cast %17 : i32 to index
      %c0_23 = arith.constant 0 : index
      %25 = vector.load %arg8[%24, %c0_23] : memref<64x256xf32, #tpu.memory_space<vmem>>, vector<8x128xf32>
      %26 = vector.extract_strided_slice %23 {offsets = [0, 0], sizes = [8, 128], strides = [1, 1]} : vector<8x256xf32> to vector<8x128xf32>
      %27 = arith.addf %25, %26 : vector<8x128xf32>
      %28 = arith.index_cast %20 : i32 to index
      %c128 = arith.constant 128 : index
      %29 = vector.load %arg8[%28, %c128] : memref<64x256xf32, #tpu.memory_space<vmem>>, vector<8x128xf32>
      %30 = vector.extract_strided_slice %23 {offsets = [0, 128], sizes = [8, 128], strides = [1, 1]} : vector<8x256xf32> to vector<8x128xf32>
      %31 = arith.addf %29, %30 : vector<8x128xf32>
      %c0_24 = arith.constant 0 : index
      %c0_25 = arith.constant 0 : index
      %32 = vector.load %arg7[%c0_24, %c0_25] : memref<8x64xf32, #tpu.memory_space<vmem>>, vector<8x64xf32>
      %33 = vector.extract_strided_slice %32 {offsets = [0, 0], sizes = [8, 32], strides = [1, 1]} : vector<8x64xf32> to vector<8x32xf32>
      %34 = vector.extract_strided_slice %27 {offsets = [0, 0], sizes = [8, 32], strides = [1, 1]} : vector<8x128xf32> to vector<8x32xf32>
      %35 = arith.negf %34 : vector<8x32xf32>
      %36 = math.exp %35 : vector<8x32xf32>
      %cst_26 = arith.constant 1.000000e+00 : f32
      %37 = vector.broadcast %cst_26 : f32 to vector<8x32xf32>
      %38 = arith.addf %37, %36 : vector<8x32xf32>
      %39 = arith.divf %37, %38 : vector<8x32xf32>
      %40 = vector.extract_strided_slice %27 {offsets = [0, 32], sizes = [8, 32], strides = [1, 1]} : vector<8x128xf32> to vector<8x32xf32>
      %41 = arith.negf %40 : vector<8x32xf32>
      %42 = math.exp %41 : vector<8x32xf32>
      %cst_27 = arith.constant 1.000000e+00 : f32
      %43 = vector.broadcast %cst_27 : f32 to vector<8x32xf32>
      %44 = arith.addf %43, %42 : vector<8x32xf32>
      %45 = arith.divf %43, %44 : vector<8x32xf32>
      %46 = vector.extract_strided_slice %27 {offsets = [0, 64], sizes = [8, 32], strides = [1, 1]} : vector<8x128xf32> to vector<8x32xf32>
      %47 = math.tanh %46 : vector<8x32xf32>
      %48 = vector.extract_strided_slice %27 {offsets = [0, 96], sizes = [8, 32], strides = [1, 1]} : vector<8x128xf32> to vector<8x32xf32>
      %49 = arith.negf %48 : vector<8x32xf32>
      %50 = math.exp %49 : vector<8x32xf32>
      %cst_28 = arith.constant 1.000000e+00 : f32
      %51 = vector.broadcast %cst_28 : f32 to vector<8x32xf32>
      %52 = arith.addf %51, %50 : vector<8x32xf32>
      %53 = arith.divf %51, %52 : vector<8x32xf32>
      %54 = arith.mulf %45, %33 : vector<8x32xf32>
      %55 = arith.mulf %39, %47 : vector<8x32xf32>
      %56 = arith.addf %54, %55 : vector<8x32xf32>
      %57 = math.tanh %56 : vector<8x32xf32>
      %58 = arith.mulf %53, %57 : vector<8x32xf32>
      %59 = vector.extract_strided_slice %32 {offsets = [0, 32], sizes = [8, 32], strides = [1, 1]} : vector<8x64xf32> to vector<8x32xf32>
      %60 = vector.extract_strided_slice %31 {offsets = [0, 0], sizes = [8, 32], strides = [1, 1]} : vector<8x128xf32> to vector<8x32xf32>
      %61 = arith.negf %60 : vector<8x32xf32>
      %62 = math.exp %61 : vector<8x32xf32>
      %cst_29 = arith.constant 1.000000e+00 : f32
      %63 = vector.broadcast %cst_29 : f32 to vector<8x32xf32>
      %64 = arith.addf %63, %62 : vector<8x32xf32>
      %65 = arith.divf %63, %64 : vector<8x32xf32>
      %66 = vector.extract_strided_slice %31 {offsets = [0, 32], sizes = [8, 32], strides = [1, 1]} : vector<8x128xf32> to vector<8x32xf32>
      %67 = arith.negf %66 : vector<8x32xf32>
      %68 = math.exp %67 : vector<8x32xf32>
      %cst_30 = arith.constant 1.000000e+00 : f32
      %69 = vector.broadcast %cst_30 : f32 to vector<8x32xf32>
      %70 = arith.addf %69, %68 : vector<8x32xf32>
      %71 = arith.divf %69, %70 : vector<8x32xf32>
      %72 = vector.extract_strided_slice %31 {offsets = [0, 64], sizes = [8, 32], strides = [1, 1]} : vector<8x128xf32> to vector<8x32xf32>
      %73 = math.tanh %72 : vector<8x32xf32>
      %74 = vector.extract_strided_slice %31 {offsets = [0, 96], sizes = [8, 32], strides = [1, 1]} : vector<8x128xf32> to vector<8x32xf32>
      %75 = arith.negf %74 : vector<8x32xf32>
      %76 = math.exp %75 : vector<8x32xf32>
      %cst_31 = arith.constant 1.000000e+00 : f32
      %77 = vector.broadcast %cst_31 : f32 to vector<8x32xf32>
      %78 = arith.addf %77, %76 : vector<8x32xf32>
      %79 = arith.divf %77, %78 : vector<8x32xf32>
      %80 = arith.mulf %71, %59 : vector<8x32xf32>
      %81 = arith.mulf %65, %73 : vector<8x32xf32>
      %82 = arith.addf %80, %81 : vector<8x32xf32>
      %83 = math.tanh %82 : vector<8x32xf32>
      %84 = arith.mulf %79, %83 : vector<8x32xf32>
      %85 = tpu.concatenate %58, %84 in 1 : vector<8x32xf32>, vector<8x32xf32> -> vector<8x64xf32>
      %c0_32 = arith.constant 0 : index
      %c0_33 = arith.constant 0 : index
      %86 = vector.load %arg6[%c0_32, %c0_33] : memref<8x64xf32, #tpu.memory_space<vmem>>, vector<8x64xf32>
      tpu.vector_store %arg6[%c0_32, %c0_33], %85 {strides = array<i32>} : memref<8x64xf32, #tpu.memory_space<vmem>>, vector<8x64xf32>,
      %87 = tpu.concatenate %56, %82 in 1 : vector<8x32xf32>, vector<8x32xf32> -> vector<8x64xf32>
      %c0_34 = arith.constant 0 : index
      %c0_35 = arith.constant 0 : index
      %88 = vector.load %arg7[%c0_34, %c0_35] : memref<8x64xf32, #tpu.memory_space<vmem>>, vector<8x64xf32>
      tpu.vector_store %arg7[%c0_34, %c0_35], %87 {strides = array<i32>} : memref<8x64xf32, #tpu.memory_space<vmem>>, vector<8x64xf32>,
      %89 = arith.index_cast %17 : i32 to index
      %c0_36 = arith.constant 0 : index
      %90 = vector.load %arg5[%89, %c0_36] : memref<64x64xf32, #tpu.memory_space<vmem>>, vector<8x32xf32>
      tpu.vector_store %arg5[%89, %c0_36], %58 {strides = array<i32>} : memref<64x64xf32, #tpu.memory_space<vmem>>, vector<8x32xf32>,
      %91 = arith.index_cast %20 : i32 to index
      %c32 = arith.constant 32 : index
      %92 = vector.load %arg5[%91, %c32] : memref<64x64xf32, #tpu.memory_space<vmem>>, vector<8x32xf32>
      tpu.vector_store %arg5[%91, %c32], %84 {strides = array<i32>} : memref<64x64xf32, #tpu.memory_space<vmem>>, vector<8x32xf32>,
    }
    %c8_i32_15 = arith.constant 8 : i32
    return
  }
  func.func @transform_0(%arg0: i32) -> (i32, i32) {
    %c0_i32 = arith.constant 0 : i32
    %c0_i32_0 = arith.constant 0 : i32
    %c0_i32_1 = arith.constant 0 : i32
    return %c0_i32, %c0_i32_0 : i32, i32
  }
  func.func @transform_1(%arg0: i32) -> (i32, i32) {
    %c0_i32 = arith.constant 0 : i32
    %c0_i32_0 = arith.constant 0 : i32
    %c0_i32_1 = arith.constant 0 : i32
    return %c0_i32, %c0_i32_0 : i32, i32
  }
  func.func @transform_2(%arg0: i32) -> (i32, i32) {
    %c0_i32 = arith.constant 0 : i32
    %c0_i32_0 = arith.constant 0 : i32
    %c0_i32_1 = arith.constant 0 : i32
    return %c0_i32, %c0_i32_0 : i32, i32
  }
  func.func @transform_3(%arg0: i32) -> (i32, i32) {
    %c0_i32 = arith.constant 0 : i32
    %c0_i32_0 = arith.constant 0 : i32
    %c0_i32_1 = arith.constant 0 : i32
    return %c0_i32, %c0_i32_0 : i32, i32
  }
  func.func @transform_4(%arg0: i32) -> (i32, i32) {
    %c0_i32 = arith.constant 0 : i32
    %c0_i32_0 = arith.constant 0 : i32
    %c0_i32_1 = arith.constant 0 : i32
    return %c0_i32, %c0_i32_0 : i32, i32
  }
}

module attributes {stable_mosaic.version = 11 : i64} {
  func.func @_bilstm_layer_kernel(%arg0: i32, %arg1: memref<64x64xf32, #tpu.memory_space<vmem>>, %arg2: memref<64x256xbf16, #tpu.memory_space<vmem>>, %arg3: memref<64x256xbf16, #tpu.memory_space<vmem>>, %arg4: memref<1x256xf32, #tpu.memory_space<vmem>>, %arg5: memref<32x1xf32, #tpu.memory_space<vmem>>, %arg6: memref<1x1xf32, #tpu.memory_space<vmem>>, %arg7: memref<64x64xf32, #tpu.memory_space<vmem>>, %arg8: memref<8x1xf32, #tpu.memory_space<vmem>>, %arg9: memref<8x64xf32, #tpu.memory_space<vmem>>, %arg10: memref<8x64xf32, #tpu.memory_space<vmem>>, %arg11: memref<64x256xf32, #tpu.memory_space<vmem>>) attributes {dimension_semantics = [#tpu.dimension_semantics<arbitrary>], iteration_bounds = array<i64: 1>, scalar_prefetch = 0 : i64, scratch_operands = 3 : i64, tpu.core_type = #tpu.core_type<tc>, window_params = [{pipeline_mode = #tpu.pipeline_mode<synchronous>, transform_indices = @transform_0, window_bounds = array<i64: 64, 64>}, {pipeline_mode = #tpu.pipeline_mode<synchronous>, transform_indices = @transform_1, window_bounds = array<i64: 64, 256>}, {pipeline_mode = #tpu.pipeline_mode<synchronous>, transform_indices = @transform_2, window_bounds = array<i64: 64, 256>}, {pipeline_mode = #tpu.pipeline_mode<synchronous>, transform_indices = @transform_3, window_bounds = array<i64: 1, 256>}, {pipeline_mode = #tpu.pipeline_mode<synchronous>, transform_indices = @transform_4, window_bounds = array<i64: 32, 1>}, {pipeline_mode = #tpu.pipeline_mode<synchronous>, transform_indices = @transform_5, window_bounds = array<i64: 1, 1>}, {pipeline_mode = #tpu.pipeline_mode<synchronous>, transform_indices = @transform_6, window_bounds = array<i64: 64, 64>}, {pipeline_mode = #tpu.pipeline_mode<synchronous>, transform_indices = @transform_7, window_bounds = array<i64: 8, 1>}]} {
    %c0 = arith.constant 0 : index
    %c0_0 = arith.constant 0 : index
    %0 = vector.load %arg1[%c0, %c0_0] : memref<64x64xf32, #tpu.memory_space<vmem>>, vector<64x64xf32>
    %1 = arith.truncf %0 : vector<64x64xf32> to vector<64x64xbf16>
    %c0_1 = arith.constant 0 : index
    %c0_2 = arith.constant 0 : index
    %2 = vector.load %arg2[%c0_1, %c0_2] : memref<64x256xbf16, #tpu.memory_space<vmem>>, vector<64x256xbf16>
    %cst = arith.constant dense<0.000000e+00> : vector<64x256xf32>
    %3 = tpu.matmul %1, %2, %cst {dimension_numbers = #tpu.dot_dimension_numbers<[1], [0], [0], [1], [0, 0, 1, 1], [], []>} : vector<64x64xbf16>, vector<64x256xbf16>, vector<64x256xf32> -> vector<64x256xf32>
    %c0_3 = arith.constant 0 : index
    %c0_4 = arith.constant 0 : index
    %4 = vector.load %arg4[%c0_3, %c0_4] : memref<1x256xf32, #tpu.memory_space<vmem>>, vector<1x256xf32>
    %5 = vector.broadcast %4 : vector<1x256xf32> to vector<64x256xf32>
    %6 = arith.addf %3, %5 : vector<64x256xf32>
    %c0_5 = arith.constant 0 : index
    %c0_6 = arith.constant 0 : index
    %7 = vector.load %arg11[%c0_5, %c0_6] : memref<64x256xf32, #tpu.memory_space<vmem>>, vector<64x256xf32>
    tpu.vector_store %arg11[%c0_5, %c0_6], %6 {strides = array<i32>} : memref<64x256xf32, #tpu.memory_space<vmem>>, vector<64x256xf32>,
    %cst_7 = arith.constant 0.000000e+00 : f32
    %8 = vector.broadcast %cst_7 : f32 to vector<8x64xf32>
    %c0_8 = arith.constant 0 : index
    %c0_9 = arith.constant 0 : index
    %9 = vector.load %arg9[%c0_8, %c0_9] : memref<8x64xf32, #tpu.memory_space<vmem>>, vector<8x64xf32>
    tpu.vector_store %arg9[%c0_8, %c0_9], %8 {strides = array<i32>} : memref<8x64xf32, #tpu.memory_space<vmem>>, vector<8x64xf32>,
    %cst_10 = arith.constant 0.000000e+00 : f32
    %10 = vector.broadcast %cst_10 : f32 to vector<8x64xf32>
    %c0_11 = arith.constant 0 : index
    %c0_12 = arith.constant 0 : index
    %11 = vector.load %arg10[%c0_11, %c0_12] : memref<8x64xf32, #tpu.memory_space<vmem>>, vector<8x64xf32>
    tpu.vector_store %arg10[%c0_11, %c0_12], %10 {strides = array<i32>} : memref<8x64xf32, #tpu.memory_space<vmem>>, vector<8x64xf32>,
    %c0_13 = arith.constant 0 : index
    %c0_14 = arith.constant 0 : index
    %12 = vector.load %arg3[%c0_13, %c0_14] : memref<64x256xbf16, #tpu.memory_space<vmem>>, vector<64x256xbf16>
    %c0_i32 = arith.constant 0 : i32
    %c8_i32 = arith.constant 8 : i32
    %13 = arith.addi %c0_i32, %c8_i32 : i32
    %c1_i32 = arith.constant 1 : i32
    scf.for %arg12 = %c0_i32 to %13 step %c1_i32  : i32 {
      %c1_i32_26 = arith.constant 1 : i32
      %27 = arith.muli %arg12, %c1_i32_26 : i32
      %c0_i32_27 = arith.constant 0 : i32
      %28 = arith.addi %c0_i32_27, %27 : i32
      %c8_i32_28 = arith.constant 8 : i32
      %29 = arith.muli %28, %c8_i32_28 : i32
      %30 = tpu.assume_multiple %29, 8 : i32
      %c7_i32 = arith.constant 7 : i32
      %31 = arith.subi %c7_i32, %28 : i32
      %c8_i32_29 = arith.constant 8 : i32
      %32 = arith.muli %31, %c8_i32_29 : i32
      %33 = tpu.assume_multiple %32, 8 : i32
      %c0_30 = arith.constant 0 : index
      %c0_31 = arith.constant 0 : index
      %34 = vector.load %arg9[%c0_30, %c0_31] : memref<8x64xf32, #tpu.memory_space<vmem>>, vector<8x64xf32>
      %35 = arith.truncf %34 : vector<8x64xf32> to vector<8x64xbf16>
      %cst_32 = arith.constant dense<0.000000e+00> : vector<8x256xf32>
      %36 = tpu.matmul %35, %12, %cst_32 {dimension_numbers = #tpu.dot_dimension_numbers<[1], [0], [0], [1], [0, 0, 1, 1], [], []>} : vector<8x64xbf16>, vector<64x256xbf16>, vector<8x256xf32> -> vector<8x256xf32>
      %37 = arith.index_cast %30 : i32 to index
      %c0_33 = arith.constant 0 : index
      %38 = vector.load %arg11[%37, %c0_33] : memref<64x256xf32, #tpu.memory_space<vmem>>, vector<8x128xf32>
      %39 = vector.extract_strided_slice %36 {offsets = [0, 0], sizes = [8, 128], strides = [1, 1]} : vector<8x256xf32> to vector<8x128xf32>
      %40 = arith.addf %38, %39 : vector<8x128xf32>
      %41 = arith.index_cast %33 : i32 to index
      %c128 = arith.constant 128 : index
      %42 = vector.load %arg11[%41, %c128] : memref<64x256xf32, #tpu.memory_space<vmem>>, vector<8x128xf32>
      %43 = vector.extract_strided_slice %36 {offsets = [0, 128], sizes = [8, 128], strides = [1, 1]} : vector<8x256xf32> to vector<8x128xf32>
      %44 = arith.addf %42, %43 : vector<8x128xf32>
      %c0_34 = arith.constant 0 : index
      %c0_35 = arith.constant 0 : index
      %45 = vector.load %arg10[%c0_34, %c0_35] : memref<8x64xf32, #tpu.memory_space<vmem>>, vector<8x64xf32>
      %46 = vector.extract_strided_slice %45 {offsets = [0, 0], sizes = [8, 32], strides = [1, 1]} : vector<8x64xf32> to vector<8x32xf32>
      %47 = vector.extract_strided_slice %40 {offsets = [0, 0], sizes = [8, 32], strides = [1, 1]} : vector<8x128xf32> to vector<8x32xf32>
      %48 = arith.negf %47 : vector<8x32xf32>
      %49 = math.exp %48 : vector<8x32xf32>
      %cst_36 = arith.constant 1.000000e+00 : f32
      %50 = vector.broadcast %cst_36 : f32 to vector<8x32xf32>
      %51 = arith.addf %50, %49 : vector<8x32xf32>
      %52 = arith.divf %50, %51 : vector<8x32xf32>
      %53 = vector.extract_strided_slice %40 {offsets = [0, 32], sizes = [8, 32], strides = [1, 1]} : vector<8x128xf32> to vector<8x32xf32>
      %54 = arith.negf %53 : vector<8x32xf32>
      %55 = math.exp %54 : vector<8x32xf32>
      %cst_37 = arith.constant 1.000000e+00 : f32
      %56 = vector.broadcast %cst_37 : f32 to vector<8x32xf32>
      %57 = arith.addf %56, %55 : vector<8x32xf32>
      %58 = arith.divf %56, %57 : vector<8x32xf32>
      %59 = vector.extract_strided_slice %40 {offsets = [0, 64], sizes = [8, 32], strides = [1, 1]} : vector<8x128xf32> to vector<8x32xf32>
      %60 = math.tanh %59 : vector<8x32xf32>
      %61 = vector.extract_strided_slice %40 {offsets = [0, 96], sizes = [8, 32], strides = [1, 1]} : vector<8x128xf32> to vector<8x32xf32>
      %62 = arith.negf %61 : vector<8x32xf32>
      %63 = math.exp %62 : vector<8x32xf32>
      %cst_38 = arith.constant 1.000000e+00 : f32
      %64 = vector.broadcast %cst_38 : f32 to vector<8x32xf32>
      %65 = arith.addf %64, %63 : vector<8x32xf32>
      %66 = arith.divf %64, %65 : vector<8x32xf32>
      %67 = arith.mulf %58, %46 : vector<8x32xf32>
      %68 = arith.mulf %52, %60 : vector<8x32xf32>
      %69 = arith.addf %67, %68 : vector<8x32xf32>
      %70 = math.tanh %69 : vector<8x32xf32>
      %71 = arith.mulf %66, %70 : vector<8x32xf32>
      %72 = vector.extract_strided_slice %45 {offsets = [0, 32], sizes = [8, 32], strides = [1, 1]} : vector<8x64xf32> to vector<8x32xf32>
      %73 = vector.extract_strided_slice %44 {offsets = [0, 0], sizes = [8, 32], strides = [1, 1]} : vector<8x128xf32> to vector<8x32xf32>
      %74 = arith.negf %73 : vector<8x32xf32>
      %75 = math.exp %74 : vector<8x32xf32>
      %cst_39 = arith.constant 1.000000e+00 : f32
      %76 = vector.broadcast %cst_39 : f32 to vector<8x32xf32>
      %77 = arith.addf %76, %75 : vector<8x32xf32>
      %78 = arith.divf %76, %77 : vector<8x32xf32>
      %79 = vector.extract_strided_slice %44 {offsets = [0, 32], sizes = [8, 32], strides = [1, 1]} : vector<8x128xf32> to vector<8x32xf32>
      %80 = arith.negf %79 : vector<8x32xf32>
      %81 = math.exp %80 : vector<8x32xf32>
      %cst_40 = arith.constant 1.000000e+00 : f32
      %82 = vector.broadcast %cst_40 : f32 to vector<8x32xf32>
      %83 = arith.addf %82, %81 : vector<8x32xf32>
      %84 = arith.divf %82, %83 : vector<8x32xf32>
      %85 = vector.extract_strided_slice %44 {offsets = [0, 64], sizes = [8, 32], strides = [1, 1]} : vector<8x128xf32> to vector<8x32xf32>
      %86 = math.tanh %85 : vector<8x32xf32>
      %87 = vector.extract_strided_slice %44 {offsets = [0, 96], sizes = [8, 32], strides = [1, 1]} : vector<8x128xf32> to vector<8x32xf32>
      %88 = arith.negf %87 : vector<8x32xf32>
      %89 = math.exp %88 : vector<8x32xf32>
      %cst_41 = arith.constant 1.000000e+00 : f32
      %90 = vector.broadcast %cst_41 : f32 to vector<8x32xf32>
      %91 = arith.addf %90, %89 : vector<8x32xf32>
      %92 = arith.divf %90, %91 : vector<8x32xf32>
      %93 = arith.mulf %84, %72 : vector<8x32xf32>
      %94 = arith.mulf %78, %86 : vector<8x32xf32>
      %95 = arith.addf %93, %94 : vector<8x32xf32>
      %96 = math.tanh %95 : vector<8x32xf32>
      %97 = arith.mulf %92, %96 : vector<8x32xf32>
      %98 = tpu.concatenate %71, %97 in 1 : vector<8x32xf32>, vector<8x32xf32> -> vector<8x64xf32>
      %c0_42 = arith.constant 0 : index
      %c0_43 = arith.constant 0 : index
      %99 = vector.load %arg9[%c0_42, %c0_43] : memref<8x64xf32, #tpu.memory_space<vmem>>, vector<8x64xf32>
      tpu.vector_store %arg9[%c0_42, %c0_43], %98 {strides = array<i32>} : memref<8x64xf32, #tpu.memory_space<vmem>>, vector<8x64xf32>,
      %100 = tpu.concatenate %69, %95 in 1 : vector<8x32xf32>, vector<8x32xf32> -> vector<8x64xf32>
      %c0_44 = arith.constant 0 : index
      %c0_45 = arith.constant 0 : index
      %101 = vector.load %arg10[%c0_44, %c0_45] : memref<8x64xf32, #tpu.memory_space<vmem>>, vector<8x64xf32>
      tpu.vector_store %arg10[%c0_44, %c0_45], %100 {strides = array<i32>} : memref<8x64xf32, #tpu.memory_space<vmem>>, vector<8x64xf32>,
      %102 = arith.index_cast %30 : i32 to index
      %c0_46 = arith.constant 0 : index
      %103 = vector.load %arg7[%102, %c0_46] : memref<64x64xf32, #tpu.memory_space<vmem>>, vector<8x32xf32>
      tpu.vector_store %arg7[%102, %c0_46], %71 {strides = array<i32>} : memref<64x64xf32, #tpu.memory_space<vmem>>, vector<8x32xf32>,
      %104 = arith.index_cast %33 : i32 to index
      %c32 = arith.constant 32 : index
      %105 = vector.load %arg7[%104, %c32] : memref<64x64xf32, #tpu.memory_space<vmem>>, vector<8x32xf32>
      tpu.vector_store %arg7[%104, %c32], %97 {strides = array<i32>} : memref<64x64xf32, #tpu.memory_space<vmem>>, vector<8x32xf32>,
    }
    %c8_i32_15 = arith.constant 8 : i32
    %c0_16 = arith.constant 0 : index
    %c0_17 = arith.constant 0 : index
    %14 = vector.load %arg9[%c0_16, %c0_17] : memref<8x64xf32, #tpu.memory_space<vmem>>, vector<8x64xf32>
    %15 = vector.extract_strided_slice %14 {offsets = [0, 32], sizes = [8, 32], strides = [1, 1]} : vector<8x64xf32> to vector<8x32xf32>
    %c0_18 = arith.constant 0 : index
    %c0_19 = arith.constant 0 : index
    %16 = vector.load %arg5[%c0_18, %c0_19] : memref<32x1xf32, #tpu.memory_space<vmem>>, vector<32x1xf32>
    %cst_20 = arith.constant dense<0.000000e+00> : vector<8x1xf32>
    %17 = tpu.matmul %15, %16, %cst_20 {dimension_numbers = #tpu.dot_dimension_numbers<[1], [0], [0], [1], [0, 0, 1, 1], [], []>} : vector<8x32xf32>, vector<32x1xf32>, vector<8x1xf32> -> vector<8x1xf32>
    %c0_21 = arith.constant 0 : index
    %c0_22 = arith.constant 0 : index
    %18 = vector.load %arg6[%c0_21, %c0_22] : memref<1x1xf32, #tpu.memory_space<vmem>>, vector<1x1xf32>
    %19 = vector.broadcast %18 : vector<1x1xf32> to vector<8x1xf32>
    %20 = arith.addf %17, %19 : vector<8x1xf32>
    %21 = arith.negf %20 : vector<8x1xf32>
    %22 = math.exp %21 : vector<8x1xf32>
    %cst_23 = arith.constant 1.000000e+00 : f32
    %23 = vector.broadcast %cst_23 : f32 to vector<8x1xf32>
    %24 = arith.addf %23, %22 : vector<8x1xf32>
    %25 = arith.divf %23, %24 : vector<8x1xf32>
    %c0_24 = arith.constant 0 : index
    %c0_25 = arith.constant 0 : index
    %26 = vector.load %arg8[%c0_24, %c0_25] : memref<8x1xf32, #tpu.memory_space<vmem>>, vector<8x1xf32>
    tpu.vector_store %arg8[%c0_24, %c0_25], %25 {strides = array<i32>} : memref<8x1xf32, #tpu.memory_space<vmem>>, vector<8x1xf32>,
    return
  }
  func.func @transform_0(%arg0: i32) -> (i32, i32) {
    %c0_i32 = arith.constant 0 : i32
    %c0_i32_0 = arith.constant 0 : i32
    %c0_i32_1 = arith.constant 0 : i32
    return %c0_i32, %c0_i32_0 : i32, i32
  }
  func.func @transform_1(%arg0: i32) -> (i32, i32) {
    %c0_i32 = arith.constant 0 : i32
    %c0_i32_0 = arith.constant 0 : i32
    %c0_i32_1 = arith.constant 0 : i32
    return %c0_i32, %c0_i32_0 : i32, i32
  }
  func.func @transform_2(%arg0: i32) -> (i32, i32) {
    %c0_i32 = arith.constant 0 : i32
    %c0_i32_0 = arith.constant 0 : i32
    %c0_i32_1 = arith.constant 0 : i32
    return %c0_i32, %c0_i32_0 : i32, i32
  }
  func.func @transform_3(%arg0: i32) -> (i32, i32) {
    %c0_i32 = arith.constant 0 : i32
    %c0_i32_0 = arith.constant 0 : i32
    %c0_i32_1 = arith.constant 0 : i32
    return %c0_i32, %c0_i32_0 : i32, i32
  }
  func.func @transform_4(%arg0: i32) -> (i32, i32) {
    %c0_i32 = arith.constant 0 : i32
    %c0_i32_0 = arith.constant 0 : i32
    %c0_i32_1 = arith.constant 0 : i32
    return %c0_i32, %c0_i32_0 : i32, i32
  }
  func.func @transform_5(%arg0: i32) -> (i32, i32) {
    %c0_i32 = arith.constant 0 : i32
    %c0_i32_0 = arith.constant 0 : i32
    %c0_i32_1 = arith.constant 0 : i32
    return %c0_i32, %c0_i32_0 : i32, i32
  }
  func.func @transform_6(%arg0: i32) -> (i32, i32) {
    %c0_i32 = arith.constant 0 : i32
    %c0_i32_0 = arith.constant 0 : i32
    %c0_i32_1 = arith.constant 0 : i32
    return %c0_i32, %c0_i32_0 : i32, i32
  }
  func.func @transform_7(%arg0: i32) -> (i32, i32) {
    %c0_i32 = arith.constant 0 : i32
    %c0_i32_0 = arith.constant 0 : i32
    %c0_i32_1 = arith.constant 0 : i32
    return %c0_i32, %c0_i32_0 : i32, i32
  }
}

</mosaic_0001>

<llo_original>
// kernel: lstm_forward.2
$region0: #{lstm_forward.2}
  #allocation0 [shape = 'u32[]', space=smem, size = 0x4, offset = 0x4, fixed_abs, tag = 'smem constant byte address 0x4 - core index']
  #allocation1 [shape = 'u32[144,128]{1,0:T(1,128)}', space=vmem, size = 0x12000, scoped, tag = 'internal scratch']
  #allocation2 [shape = 'f32[8,64]{1,0:T(8,128)}', space=vmem, size = 0x1000, scoped, tag = 'scratch operand']
  #allocation3 [shape = 'f32[8,64]{1,0:T(8,128)}', space=vmem, size = 0x1000, scoped, tag = 'scratch operand']
  #allocation4 [shape = 'f32[64,256]{1,0:T(8,128)}', space=vmem, size = 0x10000, scoped, tag = 'scratch operand']
  %s0 = inlined_call_operand.vmem [shape: f32[64,32], index: 0, kind: input, shape index: {}]
  %s1 = inlined_call_operand.vmem [shape: bf16[32,256], index: 1, kind: input, shape index: {}]
  %s2 = inlined_call_operand.vmem [shape: bf16[64,256], index: 2, kind: input, shape index: {}]
  %s3 = inlined_call_operand.vmem [shape: f32[1,256], index: 3, kind: input, shape index: {}]
  %s4 = inlined_call_operand.vmem [shape: f32[64,64], index: 4, kind: output, shape index: {}]
  %s5 = sld [smem:[#allocation0]]
  $region33: #{lstm_forward.2} parent=0
    _
  %s7 = ssub.s32 1, %s5
  %s8 = scalar_select 0, %s7, %s5
  // Predicated region
  $region2: #{lstm_forward.2} parent=0 // pred_check
    _
  $region3: #{lstm_forward.2} parent=0 // pred_check_branch
    %10 = sbr.rel (0) target = $region5
  $region4: #{lstm_forward.2} parent=0 // pred_region
    _
  $region5: #{lstm_forward.2} parent=0 // pred_fallthru
    _
  // Predicated region
  $region6: #{lstm_forward.2} parent=0 // pred_check
    _
  $region7: #{lstm_forward.2} parent=0 // pred_check_branch
    %12 = sbr.rel (0) target = $region9
  $region8: #{lstm_forward.2} parent=0 // pred_region
    _
  $region9: #{lstm_forward.2} parent=0 // pred_fallthru
    _
  // Predicated region
  $region10: #{lstm_forward.2} parent=0 // pred_check
    _
  $region11: #{lstm_forward.2} parent=0 // pred_check_branch
    %14 = sbr.rel (0) target = $region13
  $region12: #{lstm_forward.2} parent=0 // pred_region
    _
  $region13: #{lstm_forward.2} parent=0 // pred_fallthru
    _
  // Predicated region
  $region14: #{lstm_forward.2} parent=0 // pred_check
    _
  $region15: #{lstm_forward.2} parent=0 // pred_check_branch
    %16 = sbr.rel (0) target = $region17
  $region16: #{lstm_forward.2} parent=0 // pred_region
    _
  $region17: #{lstm_forward.2} parent=0 // pred_fallthru
    _
  %v18 = vld [vmem:[%s0] sm:$0xff]
  %v19 = vld [vmem:[%s0 + $0x8] sm:$0xff]
  %v20 = vld [vmem:[%s0 + $0x10] sm:$0xff]
  %v21 = vld [vmem:[%s0 + $0x18] sm:$0xff]
  %v22 = vld [vmem:[%s0 + $0x20] sm:$0xff]
  %v23 = vld [vmem:[%s0 + $0x28] sm:$0xff]
  %v24 = vld [vmem:[%s0 + $0x30] sm:$0xff]
  %v25 = vld [vmem:[%s0 + $0x38] sm:$0xff]
  %v26 = vpack.c.bf16 %v19, %v18
  %v27 = vpack.c.bf16 %v21, %v20
  %v28 = vpack.c.bf16 %v23, %v22
  %v29 = vpack.c.bf16 %v25, %v24
  %v30 = vld [vmem:[%s1] sm:$0xff]
  %v31 = vld [vmem:[%s1 + $0x8] sm:$0xff]
  %v32 = vld [vmem:[%s1 + $0x10] sm:$0xff]
  %v33 = vld [vmem:[%s1 + $0x18] sm:$0xff]
  %v34 = vld [vmem:[%s3] sm:$0x3]
  %v36 = vlaneseq
  %v37 = vshrl.u32 %v36, 7
  %v38 = vsub.s32 0, %v37
  %v39 = vrot.slane %v34, %v38
  %v40 = vlaneseq
  %v41 = vshrl.u32 %v40, 7
  %v42 = vsub.s32 1, %v41
  %v43 = vrot.slane %v34, %v42
  %v50 = vunpack.c.l.b16 %v30
  %v51 = vunpack.c.h.b16 %v30
  %v52 = vunpack.c.l.b16 %v31
  %v53 = vunpack.c.h.b16 %v31
  %v54 = vunpack.c.l.b16 %v32
  %v55 = vunpack.c.h.b16 %v32
  %v56 = vunpack.c.l.b16 %v33
  %v57 = vunpack.c.h.b16 %v33
  %v58 = vpack.c.b16 %v52, %v50
  %v59 = vpack.c.b16 %v53, %v51
  %v60 = vpack.c.b16 %v56, %v54
  %v61 = vpack.c.b16 %v57, %v55
  %vm66 = vcmask 261120
  %v68 = vsel %vm66, %v26, 0
  %v71 = vsel %vm66, %v27, 0
  %v74 = vsel %vm66, %v28, 0
  %v77 = vsel %vm66, %v29, 0
  %79 = vmatprep.subr.bf16.mxu0 %v59
  %80 = vmatpush1.bf16.msra.mxu0 %v58
  %81 = vmatprep.subr.bf16.mxu0 %v61
  %82 = vmatpush1.bf16.msra.mxu0 %v60
  %83 = vmatprep.subr.bf16.mxu0 0
  %84 = vmatpush1.bf16.msra.mxu0 0
  %85 = vmatprep.subr.bf16.mxu0 0
  %86 = vmatpush1.bf16.msra.mxu0 0
  %87 = vmatprep.subr.bf16.mxu0 0
  %88 = vmatpush1.bf16.msra.mxu0 0
  %89 = vmatprep.subr.bf16.mxu0 0
  %90 = vmatpush1.bf16.msra.mxu0 0
  %91 = vmatprep.subr.bf16.mxu0 0
  %92 = vmatpush1.bf16.msra.mxu0 0
  %93 = vmatprep.subr.bf16.mxu0 0
  %94 = vmatpush1.bf16.msra.mxu0 0
  %95 = vmatprep.subr.bf16.mxu0 0
  %96 = vmatpush1.bf16.msra.mxu0 0
  %97 = vmatprep.subr.bf16.mxu0 0
  %98 = vmatpush1.bf16.msra.mxu0 0
  %99 = vmatprep.subr.bf16.mxu0 0
  %100 = vmatpush1.bf16.msra.mxu0 0
  %101 = vmatprep.subr.bf16.mxu0 0
  %102 = vmatpush1.bf16.msra.mxu0 0
  %103 = vmatprep.subr.bf16.mxu0 0
  %104 = vmatpush1.bf16.msra.mxu0 0
  %105 = vmatprep.subr.bf16.mxu0 0
  %106 = vmatpush1.bf16.msra.mxu0 0
  %107 = vmatprep.subr.bf16.mxu0 0
  %108 = vmatpush1.bf16.msra.mxu0 0
  %109 = vmatprep.subr.bf16.mxu0 0
  %110 = vmatpush1.bf16.msra.mxu0 0
  %111 = vmatprep.mubr.bf16.mxu0 0
  %112 = vmatmul.mubr.bf16.gmra.mrb[0].mxu0 %v68
  %v113 = vpop.f32.mrb[0].mxu0
  %v114 = vadd.f32 %v39, %v113
  %v115 = vpop.f32.mrb[0].mxu0
  %v116 = vadd.f32 %v43, %v115
  %v117 = vpop.f32.mrb[0].mxu0
  %v118 = vadd.f32 %v39, %v117
  %v119 = vpop.f32.mrb[0].mxu0
  %v120 = vadd.f32 %v43, %v119
  %121 = vmatprep.mubr.bf16.mxu0 0
  %122 = vmatmul.mubr.bf16.gmra.mrb[0].mxu0 %v71
  %v123 = vpop.f32.mrb[0].mxu0
  %v124 = vadd.f32 %v39, %v123
  %v125 = vpop.f32.mrb[0].mxu0
  %v126 = vadd.f32 %v43, %v125
  %v127 = vpop.f32.mrb[0].mxu0
  %v128 = vadd.f32 %v39, %v127
  %v129 = vpop.f32.mrb[0].mxu0
  %v130 = vadd.f32 %v43, %v129
  %131 = vmatprep.mubr.bf16.mxu0 0
  %132 = vmatmul.mubr.bf16.gmra.mrb[0].mxu0 %v74
  %v133 = vpop.f32.mrb[0].mxu0
  %v134 = vadd.f32 %v39, %v133
  %v135 = vpop.f32.mrb[0].mxu0
  %v136 = vadd.f32 %v43, %v135
  %v137 = vpop.f32.mrb[0].mxu0
  %v138 = vadd.f32 %v39, %v137
  %v139 = vpop.f32.mrb[0].mxu0
  %v140 = vadd.f32 %v43, %v139
  %141 = vmatprep.mubr.bf16.mxu0 0
  %142 = vmatmul.mubr.bf16.gmra.mrb[0].mxu0 %v77
  %v143 = vpop.f32.mrb[0].mxu0
  %v144 = vadd.f32 %v39, %v143
  %v145 = vpop.f32.mrb[0].mxu0
  %v146 = vadd.f32 %v43, %v145
  %v147 = vpop.f32.mrb[0].mxu0
  %v148 = vadd.f32 %v39, %v147
  %v149 = vpop.f32.mrb[0].mxu0
  %v150 = vadd.f32 %v43, %v149
  %151 = vdwg.mxu0
  %152 = vst [vmem:[#allocation4] sm:$0xff] %v114
  %153 = vst [vmem:[#allocation4 + $0x8] sm:$0xff] %v116
  %154 = vst [vmem:[#allocation4 + $0x10] sm:$0xff] %v118
  %155 = vst [vmem:[#allocation4 + $0x18] sm:$0xff] %v120
  %156 = vst [vmem:[#allocation4 + $0x20] sm:$0xff] %v124
  %157 = vst [vmem:[#allocation4 + $0x28] sm:$0xff] %v126
  %158 = vst [vmem:[#allocation4 + $0x30] sm:$0xff] %v128
  %159 = vst [vmem:[#allocation4 + $0x38] sm:$0xff] %v130
  %160 = vst [vmem:[#allocation4 + $0x40] sm:$0xff] %v134
  %161 = vst [vmem:[#allocation4 + $0x48] sm:$0xff] %v136
  %162 = vst [vmem:[#allocation4 + $0x50] sm:$0xff] %v138
  %163 = vst [vmem:[#allocation4 + $0x58] sm:$0xff] %v140
  %164 = vst [vmem:[#allocation4 + $0x60] sm:$0xff] %v144
  %165 = vst [vmem:[#allocation4 + $0x68] sm:$0xff] %v146
  %166 = vst [vmem:[#allocation4 + $0x70] sm:$0xff] %v148
  %167 = vst [vmem:[#allocation4 + $0x78] sm:$0xff] %v150
  %vm168 = vcmask 523264
  %169 = vst.msk [vmem:[#allocation2] sm:$0xff] %vm168, 0.0
  %170 = vst.msk [vmem:[#allocation3] sm:$0xff] %vm168, 0.0
  %v171 = vld [vmem:[%s2] sm:$0xff]
  %v172 = vld [vmem:[%s2 + $0x8] sm:$0xff]
  %v173 = vld [vmem:[%s2 + $0x10] sm:$0xff]
  %v174 = vld [vmem:[%s2 + $0x18] sm:$0xff]
  %v175 = vld [vmem:[%s2 + $0x20] sm:$0xff]
  %v176 = vld [vmem:[%s2 + $0x28] sm:$0xff]
  %v177 = vld [vmem:[%s2 + $0x30] sm:$0xff]
  %v178 = vld [vmem:[%s2 + $0x38] sm:$0xff]
  loop: start=0, step=1, limit=8
  $region18: #{lstm_forward.2} parent=0 // loop_pre_header
    _
  $region19: #{lstm_forward.2} parent=0 // loop_header
    %s180 = sphi 0, %s184
    %p181 = scmp.ge.s32.totalorder %s180, 8
  $region20: #{lstm_forward.2} parent=0 // loop_header_branch
    %183 = sbr.rel (%p181) target = $region24
  $region21: #{lstm_forward.2} parent=0 // loop_body
    %s185 = smul.u32 %s180, 8
    %s186 = ssub.s32 7, %s180
    %s187 = smul.u32 %s186, 8
    %v188 = vld [vmem:[#allocation2] sm:$0xff]
    %v189 = vpack.c.bf16 %v188, %v188
    %v198 = vunpack.c.l.b16 %v171
    %v199 = vunpack.c.h.b16 %v171
    %v200 = vunpack.c.l.b16 %v172
    %v201 = vunpack.c.h.b16 %v172
    %v202 = vunpack.c.l.b16 %v173
    %v203 = vunpack.c.h.b16 %v173
    %v204 = vunpack.c.l.b16 %v174
    %v205 = vunpack.c.h.b16 %v174
    %v206 = vunpack.c.l.b16 %v175
    %v207 = vunpack.c.h.b16 %v175
    %v208 = vunpack.c.l.b16 %v176
    %v209 = vunpack.c.h.b16 %v176
    %v210 = vunpack.c.l.b16 %v177
    %v211 = vunpack.c.h.b16 %v177
    %v212 = vunpack.c.l.b16 %v178
    %v213 = vunpack.c.h.b16 %v178
    %v214 = vpack.c.b16 %v200, %v198
    %v215 = vpack.c.b16 %v201, %v199
    %v216 = vpack.c.b16 %v204, %v202
    %v217 = vpack.c.b16 %v205, %v203
    %v218 = vpack.c.b16 %v208, %v206
    %v219 = vpack.c.b16 %v209, %v207
    %v220 = vpack.c.b16 %v212, %v210
    %v221 = vpack.c.b16 %v213, %v211
    %v231 = vsel %vm168, %v189, 0
    %233 = vmatprep.subr.bf16.mxu0 %v215
    %234 = vmatpush1.bf16.msra.mxu0 %v214
    %235 = vmatprep.subr.bf16.mxu0 %v217
    %236 = vmatpush1.bf16.msra.mxu0 %v216
    %237 = vmatprep.subr.bf16.mxu0 %v219
    %238 = vmatpush1.bf16.msra.mxu0 %v218
    %239 = vmatprep.subr.bf16.mxu0 %v221
    %240 = vmatpush1.bf16.msra.mxu0 %v220
    %241 = vmatprep.subr.bf16.mxu0 0
    %242 = vmatpush1.bf16.msra.mxu0 0
    %243 = vmatprep.subr.bf16.mxu0 0
    %244 = vmatpush1.bf16.msra.mxu0 0
    %245 = vmatprep.subr.bf16.mxu0 0
    %246 = vmatpush1.bf16.msra.mxu0 0
    %247 = vmatprep.subr.bf16.mxu0 0
    %248 = vmatpush1.bf16.msra.mxu0 0
    %249 = vmatprep.subr.bf16.mxu0 0
    %250 = vmatpush1.bf16.msra.mxu0 0
    %251 = vmatprep.subr.bf16.mxu0 0
    %252 = vmatpush1.bf16.msra.mxu0 0
    %253 = vmatprep.subr.bf16.mxu0 0
    %254 = vmatpush1.bf16.msra.mxu0 0
    %255 = vmatprep.subr.bf16.mxu0 0
    %256 = vmatpush1.bf16.msra.mxu0 0
    %257 = vmatprep.subr.bf16.mxu0 0
    %258 = vmatpush1.bf16.msra.mxu0 0
    %259 = vmatprep.subr.bf16.mxu0 0
    %260 = vmatpush1.bf16.msra.mxu0 0
    %261 = vmatprep.subr.bf16.mxu0 0
    %262 = vmatpush1.bf16.msra.mxu0 0
    %263 = vmatprep.subr.bf16.mxu0 0
    %264 = vmatpush1.bf16.msra.mxu0 0
    %265 = vmatprep.mubr.bf16.mxu0 0
    %266 = vmatmul.mubr.bf16.gmra.mrb[0].mxu0 %v231
    %v267 = vpop.f32.mrb[0].mxu0
    %v268 = vadd.f32 0.0, %v267
    %v269 = vpop.f32.mrb[0].mxu0
    %v270 = vadd.f32 0.0, %v269
    %v271 = vpop.f32.mrb[0].mxu0
    %v272 = vpop.f32.mrb[0].mxu0
    %273 = vdwg.mxu0
    %s274 = sshra.s32 %s185, 3
    %s275 = sand.u32 %s185, 7
    %s276 = smul.u32 %s274, 2
    %s277 = smul.addr %s276, 8
    %s278 = scalar_lea.vmem [#allocation4], %s277
    %v279 = vld [vmem:[%s278] sm:$0xff]
    %v280 = vadd.f32 %v279, %v268
    %s281 = sshra.s32 %s187, 3
    %s282 = sand.u32 %s187, 7
    %s283 = smul.u32 %s281, 2
    %s284 = smul.addr %s283, 8
    %s285 = scalar_lea.vmem [#allocation4], %s284
    %v286 = vld [vmem:[%s285 + $0x8] sm:$0xff]
    %v287 = vadd.f32 %v286, %v270
    %v288 = vld [vmem:[#allocation3] sm:$0xff]
    %v289 = vxor.u32 %v280, 2147483648
    %v290 = vmul.f32 %v289, 1.442695
    %v291 = vpow.pop %v290
    %v292 = vadd.f32 %v291, 1.0
    %v293 = vrcp.pop %v292
    %v294 = vmul.f32 1.0, %v293
    %v295 = vtanh.pop %v280
    %297 = vrot.lane.b32.xlu0 %v288, 32
    %v298 = vpop.permute.xlu0 %297
    %v300 = vmul.f32 %v294, %v298
    %302 = vrot.lane.b32.xlu0 %v295, 64
    %v303 = vpop.permute.xlu0 %302
    %v305 = vmul.f32 %v294, %v303
    %307 = vrot.lane.b32.xlu0 %v305, 32
    %v308 = vpop.permute.xlu0 %307
    %v310 = vadd.f32 %v300, %v308
    %v311 = vtanh.pop %v310
    %313 = vrot.lane.b32.xlu0 %v311, 64
    %v314 = vpop.permute.xlu0 %313
    %v316 = vmul.f32 %v294, %v314
    %v317 = vxor.u32 %v287, 2147483648
    %v318 = vmul.f32 %v317, 1.442695
    %v319 = vpow.pop %v318
    %v320 = vadd.f32 %v319, 1.0
    %v321 = vrcp.pop %v320
    %v322 = vmul.f32 1.0, %v321
    %v323 = vtanh.pop %v287
    %v324 = vmul.f32 %v322, %v288
    %326 = vrot.lane.b32.xlu0 %v323, 64
    %v327 = vpop.permute.xlu0 %326
    %v329 = vmul.f32 %v322, %v327
    %331 = vrot.lane.b32.xlu0 %v329, 32
    %v332 = vpop.permute.xlu0 %331
    %v334 = vadd.f32 %v324, %v332
    %v335 = vtanh.pop %v334
    %337 = vrot.lane.b32.xlu0 %v335, 64
    %v338 = vpop.permute.xlu0 %337
    %v340 = vmul.f32 %v322, %v338
    %342 = vrot.lane.b32.xlu0 %v316, 32
    %v343 = vpop.permute.xlu0 %342
    %346 = vrot.lane.b32.xlu0 %v340, 64
    %v347 = vpop.permute.xlu0 %346
    %v349 = vsel %vm66, %v343, %v347
    %350 = vst.msk [vmem:[#allocation2] sm:$0xff] %vm168, %v349
    %352 = vrot.lane.b32.xlu0 %v310, 96
    %v353 = vpop.permute.xlu0 %352
    %v355 = vsel %vm66, %v353, %v334
    %356 = vst.msk [vmem:[#allocation3] sm:$0xff] %vm168, %v355
    %s357 = scalar_lea.vmem %s4, %s185
    %358 = vst.msk [vmem:[%s357] sm:$0xff] %vm66, %v343
    %s359 = scalar_lea.vmem %s4, %s187
    %vm360 = vcmask 523520
    %361 = vst.msk [vmem:[%s359] sm:$0xff] %vm360, %v347
  $region22: #{lstm_forward.2} parent=0 // loop_footer
    %s184 = sadd.s32 1, %s180
  $region23: #{lstm_forward.2} parent=0 // loop_footer_branch
    %179 = sbr.rel target = $region19
  $region24: #{lstm_forward.2} parent=0 // loop_exit
    _
  // Predicated region
  $region25: #{lstm_forward.2} parent=0 // pred_check
    _
  $region26: #{lstm_forward.2} parent=0 // pred_check_branch
    %363 = sbr.rel (0) target = $region28
  $region27: #{lstm_forward.2} parent=0 // pred_region
    _
  $region28: #{lstm_forward.2} parent=0 // pred_fallthru
    _
  // Predicated region
  $region29: #{lstm_forward.2} parent=0 // pred_check
    _
  $region30: #{lstm_forward.2} parent=0 // pred_check_branch
    %365 = sbr.rel (0) target = $region32
  $region31: #{lstm_forward.2} parent=0 // pred_region
    _
  $region32: #{lstm_forward.2} parent=0 // pred_fallthru
    _

// kernel: lstm_forward.3
$region0: #{lstm_forward.3}
  #allocation0 [shape = 'u32[]', space=smem, size = 0x4, offset = 0x4, fixed_abs, tag = 'smem constant byte address 0x4 - core index']
  #allocation1 [shape = 'u32[144,128]{1,0:T(1,128)}', space=vmem, size = 0x12000, scoped, tag = 'internal scratch']
  #allocation2 [shape = 'f32[8,64]{1,0:T(8,128)}', space=vmem, size = 0x1000, scoped, tag = 'scratch operand']
  #allocation3 [shape = 'f32[8,64]{1,0:T(8,128)}', space=vmem, size = 0x1000, scoped, tag = 'scratch operand']
  #allocation4 [shape = 'f32[64,256]{1,0:T(8,128)}', space=vmem, size = 0x10000, scoped, tag = 'scratch operand']
  #allocation5 [shape = 'f32[1,1]{1,0:T(1,128)S(1)}', space=vmem, size = 0x200, scoped, tag = 'scoped memory for lstm_forward.3']
  %s0 = inlined_call_operand.vmem [shape: f32[64,64], index: 0, kind: input, shape index: {}]
  %s1 = inlined_call_operand.vmem [shape: bf16[64,256], index: 1, kind: input, shape index: {}]
  %s2 = inlined_call_operand.vmem [shape: bf16[64,256], index: 2, kind: input, shape index: {}]
  %s3 = inlined_call_operand.vmem [shape: f32[1,256], index: 3, kind: input, shape index: {}]
  %s4 = inlined_call_operand.vmem [shape: f32[32,1], index: 4, kind: input, shape index: {}]
  %s5 = inlined_call_operand.<no memory space> [shape: f32[1,1], index: 5, kind: input, shape index: {}]
  %s6 = inlined_call_operand.hbm [shape: f32[64,64], index: 6, kind: output, shape index: {0}]
  %s7 = inlined_call_operand.vmem [shape: f32[8,1], index: 7, kind: output, shape index: {1}]
  %8 = xla_tuple %s6, %s7
  %s9 = sld [smem:[#allocation0]]
  $region49: #{lstm_forward.3} parent=0
    _
  %s11 = ssub.s32 1, %s9
  %s12 = scalar_select 0, %s11, %s9
  %v13 = vstv %s5
  %14 = vst [vmem:[#allocation5] sm:$0x1] %v13
  $region1: #{lstm_forward.3} parent=0
    #allocation6 [shape = 'u8[32768]{0}', space=vmem, size = 0x8000, scoped, tag = 'output window, operand 0, single buffered']
    #allocation7 [shape = 's32[1]{0}', space=sflag, size = 0x4, scoped, tag = 'scoped memory for lstm_forward.3']
    %15 = vsyncpa [#allocation7], 0
    // Predicated region
    $region2: #{lstm_forward.3} parent=1 // pred_check
      _
    $region3: #{lstm_forward.3} parent=1 // pred_check_branch
      %17 = sbr.rel (0) target = $region5
    $region4: #{lstm_forward.3} parent=1 // pred_region
      _
    $region5: #{lstm_forward.3} parent=1 // pred_fallthru
      _
    // Predicated region
    $region6: #{lstm_forward.3} parent=1 // pred_check
      _
    $region7: #{lstm_forward.3} parent=1 // pred_check_branch
      %19 = sbr.rel (0) target = $region9
    $region8: #{lstm_forward.3} parent=1 // pred_region
      _
    $region9: #{lstm_forward.3} parent=1 // pred_fallthru
      _
    // Predicated region
    $region10: #{lstm_forward.3} parent=1 // pred_check
      _
    $region11: #{lstm_forward.3} parent=1 // pred_check_branch
      %21 = sbr.rel (0) target = $region13
    $region12: #{lstm_forward.3} parent=1 // pred_region
      _
    $region13: #{lstm_forward.3} parent=1 // pred_fallthru
      _
    // Predicated region
    $region14: #{lstm_forward.3} parent=1 // pred_check
      _
    $region15: #{lstm_forward.3} parent=1 // pred_check_branch
      %23 = sbr.rel (0) target = $region17
    $region16: #{lstm_forward.3} parent=1 // pred_region
      _
    $region17: #{lstm_forward.3} parent=1 // pred_fallthru
      _
    // Predicated region
    $region18: #{lstm_forward.3} parent=1 // pred_check
      _
    $region19: #{lstm_forward.3} parent=1 // pred_check_branch
      %25 = sbr.rel (0) target = $region21
    $region20: #{lstm_forward.3} parent=1 // pred_region
      _
    $region21: #{lstm_forward.3} parent=1 // pred_fallthru
      _
    // Predicated region
    $region22: #{lstm_forward.3} parent=1 // pred_check
      _
    $region23: #{lstm_forward.3} parent=1 // pred_check_branch
      %27 = sbr.rel (0) target = $region25
    $region24: #{lstm_forward.3} parent=1 // pred_region
      _
    $region25: #{lstm_forward.3} parent=1 // pred_fallthru
      _
    %v29 = vld [vmem:[%s0] sm:$0xff]
    %v30 = vld [vmem:[%s0 + $0x8] sm:$0xff]
    %v31 = vld [vmem:[%s0 + $0x10] sm:$0xff]
    %v32 = vld [vmem:[%s0 + $0x18] sm:$0xff]
    %v33 = vld [vmem:[%s0 + $0x20] sm:$0xff]
    %v34 = vld [vmem:[%s0 + $0x28] sm:$0xff]
    %v35 = vld [vmem:[%s0 + $0x30] sm:$0xff]
    %v36 = vld [vmem:[%s0 + $0x38] sm:$0xff]
    %v37 = vpack.c.bf16 %v30, %v29
    %v38 = vpack.c.bf16 %v32, %v31
    %v39 = vpack.c.bf16 %v34, %v33
    %v40 = vpack.c.bf16 %v36, %v35
    %v41 = vld [vmem:[%s1] sm:$0xff]
    %v42 = vld [vmem:[%s1 + $0x8] sm:$0xff]
    %v43 = vld [vmem:[%s1 + $0x10] sm:$0xff]
    %v44 = vld [vmem:[%s1 + $0x18] sm:$0xff]
    %v45 = vld [vmem:[%s1 + $0x20] sm:$0xff]
    %v46 = vld [vmem:[%s1 + $0x28] sm:$0xff]
    %v47 = vld [vmem:[%s1 + $0x30] sm:$0xff]
    %v48 = vld [vmem:[%s1 + $0x38] sm:$0xff]
    %v49 = vld [vmem:[%s3] sm:$0x3]
    %v51 = vlaneseq
    %v52 = vshrl.u32 %v51, 7
    %v53 = vsub.s32 0, %v52
    %v54 = vrot.slane %v49, %v53
    %v55 = vlaneseq
    %v56 = vshrl.u32 %v55, 7
    %v57 = vsub.s32 1, %v56
    %v58 = vrot.slane %v49, %v57
    %v69 = vunpack.c.l.b16 %v41
    %v70 = vunpack.c.h.b16 %v41
    %v71 = vunpack.c.l.b16 %v42
    %v72 = vunpack.c.h.b16 %v42
    %v73 = vunpack.c.l.b16 %v43
    %v74 = vunpack.c.h.b16 %v43
    %v75 = vunpack.c.l.b16 %v44
    %v76 = vunpack.c.h.b16 %v44
    %v77 = vunpack.c.l.b16 %v45
    %v78 = vunpack.c.h.b16 %v45
    %v79 = vunpack.c.l.b16 %v46
    %v80 = vunpack.c.h.b16 %v46
    %v81 = vunpack.c.l.b16 %v47
    %v82 = vunpack.c.h.b16 %v47
    %v83 = vunpack.c.l.b16 %v48
    %v84 = vunpack.c.h.b16 %v48
    %v85 = vpack.c.b16 %v71, %v69
    %v86 = vpack.c.b16 %v72, %v70
    %v87 = vpack.c.b16 %v75, %v73
    %v88 = vpack.c.b16 %v76, %v74
    %v89 = vpack.c.b16 %v79, %v77
    %v90 = vpack.c.b16 %v80, %v78
    %v91 = vpack.c.b16 %v83, %v81
    %v92 = vpack.c.b16 %v84, %v82
    %vm101 = vcmask 523264
    %v103 = vsel %vm101, %v37, 0
    %v106 = vsel %vm101, %v38, 0
    %v109 = vsel %vm101, %v39, 0
    %v112 = vsel %vm101, %v40, 0
    %114 = vmatprep.subr.bf16.mxu0 %v86
    %115 = vmatpush1.bf16.msra.mxu0 %v85
    %116 = vmatprep.subr.bf16.mxu0 %v88
    %117 = vmatpush1.bf16.msra.mxu0 %v87
    %118 = vmatprep.subr.bf16.mxu0 %v90
    %119 = vmatpush1.bf16.msra.mxu0 %v89
    %120 = vmatprep.subr.bf16.mxu0 %v92
    %121 = vmatpush1.bf16.msra.mxu0 %v91
    %122 = vmatprep.subr.bf16.mxu0 0
    %123 = vmatpush1.bf16.msra.mxu0 0
    %124 = vmatprep.subr.bf16.mxu0 0
    %125 = vmatpush1.bf16.msra.mxu0 0
    %126 = vmatprep.subr.bf16.mxu0 0
    %127 = vmatpush1.bf16.msra.mxu0 0
    %128 = vmatprep.subr.bf16.mxu0 0
    %129 = vmatpush1.bf16.msra.mxu0 0
    %130 = vmatprep.subr.bf16.mxu0 0
    %131 = vmatpush1.bf16.msra.mxu0 0
    %132 = vmatprep.subr.bf16.mxu0 0
    %133 = vmatpush1.bf16.msra.mxu0 0
    %134 = vmatprep.subr.bf16.mxu0 0
    %135 = vmatpush1.bf16.msra.mxu0 0
    %136 = vmatprep.subr.bf16.mxu0 0
    %137 = vmatpush1.bf16.msra.mxu0 0
    %138 = vmatprep.subr.bf16.mxu0 0
    %139 = vmatpush1.bf16.msra.mxu0 0
    %140 = vmatprep.subr.bf16.mxu0 0
    %141 = vmatpush1.bf16.msra.mxu0 0
    %142 = vmatprep.subr.bf16.mxu0 0
    %143 = vmatpush1.bf16.msra.mxu0 0
    %144 = vmatprep.subr.bf16.mxu0 0
    %145 = vmatpush1.bf16.msra.mxu0 0
    %146 = vmatprep.mubr.bf16.mxu0 0
    %147 = vmatmul.mubr.bf16.gmra.mrb[0].mxu0 %v103
    %v148 = vpop.f32.mrb[0].mxu0
    %v149 = vadd.f32 %v54, %v148
    %v150 = vpop.f32.mrb[0].mxu0
    %v151 = vadd.f32 %v58, %v150
    %v152 = vpop.f32.mrb[0].mxu0
    %v153 = vadd.f32 %v54, %v152
    %v154 = vpop.f32.mrb[0].mxu0
    %v155 = vadd.f32 %v58, %v154
    %156 = vmatprep.mubr.bf16.mxu0 0
    %157 = vmatmul.mubr.bf16.gmra.mrb[0].mxu0 %v106
    %v158 = vpop.f32.mrb[0].mxu0
    %v159 = vadd.f32 %v54, %v158
    %v160 = vpop.f32.mrb[0].mxu0
    %v161 = vadd.f32 %v58, %v160
    %v162 = vpop.f32.mrb[0].mxu0
    %v163 = vadd.f32 %v54, %v162
    %v164 = vpop.f32.mrb[0].mxu0
    %v165 = vadd.f32 %v58, %v164
    %166 = vmatprep.mubr.bf16.mxu0 0
    %167 = vmatmul.mubr.bf16.gmra.mrb[0].mxu0 %v109
    %v168 = vpop.f32.mrb[0].mxu0
    %v169 = vadd.f32 %v54, %v168
    %v170 = vpop.f32.mrb[0].mxu0
    %v171 = vadd.f32 %v58, %v170
    %v172 = vpop.f32.mrb[0].mxu0
    %v173 = vadd.f32 %v54, %v172
    %v174 = vpop.f32.mrb[0].mxu0
    %v175 = vadd.f32 %v58, %v174
    %176 = vmatprep.mubr.bf16.mxu0 0
    %177 = vmatmul.mubr.bf16.gmra.mrb[0].mxu0 %v112
    %v178 = vpop.f32.mrb[0].mxu0
    %v179 = vadd.f32 %v54, %v178
    %v180 = vpop.f32.mrb[0].mxu0
    %v181 = vadd.f32 %v58, %v180
    %v182 = vpop.f32.mrb[0].mxu0
    %v183 = vadd.f32 %v54, %v182
    %v184 = vpop.f32.mrb[0].mxu0
    %v185 = vadd.f32 %v58, %v184
    %186 = vdwg.mxu0
    %187 = vst [vmem:[#allocation4] sm:$0xff] %v149
    %188 = vst [vmem:[#allocation4 + $0x8] sm:$0xff] %v151
    %189 = vst [vmem:[#allocation4 + $0x10] sm:$0xff] %v153
    %190 = vst [vmem:[#allocation4 + $0x18] sm:$0xff] %v155
    %191 = vst [vmem:[#allocation4 + $0x20] sm:$0xff] %v159
    %192 = vst [vmem:[#allocation4 + $0x28] sm:$0xff] %v161
    %193 = vst [vmem:[#allocation4 + $0x30] sm:$0xff] %v163
    %194 = vst [vmem:[#allocation4 + $0x38] sm:$0xff] %v165
    %195 = vst [vmem:[#allocation4 + $0x40] sm:$0xff] %v169
    %196 = vst [vmem:[#allocation4 + $0x48] sm:$0xff] %v171
    %197 = vst [vmem:[#allocation4 + $0x50] sm:$0xff] %v173
    %198 = vst [vmem:[#allocation4 + $0x58] sm:$0xff] %v175
    %199 = vst [vmem:[#allocation4 + $0x60] sm:$0xff] %v179
    %200 = vst [vmem:[#allocation4 + $0x68] sm:$0xff] %v181
    %201 = vst [vmem:[#allocation4 + $0x70] sm:$0xff] %v183
    %202 = vst [vmem:[#allocation4 + $0x78] sm:$0xff] %v185
    %203 = vst.msk [vmem:[#allocation2] sm:$0xff] %vm101, 0.0
    %204 = vst.msk [vmem:[#allocation3] sm:$0xff] %vm101, 0.0
    %v205 = vld [vmem:[%s2] sm:$0xff]
    %v206 = vld [vmem:[%s2 + $0x8] sm:$0xff]
    %v207 = vld [vmem:[%s2 + $0x10] sm:$0xff]
    %v208 = vld [vmem:[%s2 + $0x18] sm:$0xff]
    %v209 = vld [vmem:[%s2 + $0x20] sm:$0xff]
    %v210 = vld [vmem:[%s2 + $0x28] sm:$0xff]
    %v211 = vld [vmem:[%s2 + $0x30] sm:$0xff]
    %v212 = vld [vmem:[%s2 + $0x38] sm:$0xff]
    loop: start=0, step=1, limit=8
    $region26: #{lstm_forward.3} parent=1 // loop_pre_header
      _
    $region27: #{lstm_forward.3} parent=1 // loop_header
      %s214 = sphi 0, %s218
      %p215 = scmp.ge.s32.totalorder %s214, 8
    $region28: #{lstm_forward.3} parent=1 // loop_header_branch
      %217 = sbr.rel (%p215) target = $region32
    $region29: #{lstm_forward.3} parent=1 // loop_body
      %s219 = smul.u32 %s214, 8
      %s220 = ssub.s32 7, %s214
      %s221 = smul.u32 %s220, 8
      %v222 = vld [vmem:[#allocation2] sm:$0xff]
      %v223 = vpack.c.bf16 %v222, %v222
      %v232 = vunpack.c.l.b16 %v205
      %v233 = vunpack.c.h.b16 %v205
      %v234 = vunpack.c.l.b16 %v206
      %v235 = vunpack.c.h.b16 %v206
      %v236 = vunpack.c.l.b16 %v207
      %v237 = vunpack.c.h.b16 %v207
      %v238 = vunpack.c.l.b16 %v208
      %v239 = vunpack.c.h.b16 %v208
      %v240 = vunpack.c.l.b16 %v209
      %v241 = vunpack.c.h.b16 %v209
      %v242 = vunpack.c.l.b16 %v210
      %v243 = vunpack.c.h.b16 %v210
      %v244 = vunpack.c.l.b16 %v211
      %v245 = vunpack.c.h.b16 %v211
      %v246 = vunpack.c.l.b16 %v212
      %v247 = vunpack.c.h.b16 %v212
      %v248 = vpack.c.b16 %v234, %v232
      %v249 = vpack.c.b16 %v235, %v233
      %v250 = vpack.c.b16 %v238, %v236
      %v251 = vpack.c.b16 %v239, %v237
      %v252 = vpack.c.b16 %v242, %v240
      %v253 = vpack.c.b16 %v243, %v241
      %v254 = vpack.c.b16 %v246, %v244
      %v255 = vpack.c.b16 %v247, %v245
      %v265 = vsel %vm101, %v223, 0
      %267 = vmatprep.subr.bf16.mxu0 %v249
      %268 = vmatpush1.bf16.msra.mxu0 %v248
      %269 = vmatprep.subr.bf16.mxu0 %v251
      %270 = vmatpush1.bf16.msra.mxu0 %v250
      %271 = vmatprep.subr.bf16.mxu0 %v253
      %272 = vmatpush1.bf16.msra.mxu0 %v252
      %273 = vmatprep.subr.bf16.mxu0 %v255
      %274 = vmatpush1.bf16.msra.mxu0 %v254
      %275 = vmatprep.subr.bf16.mxu0 0
      %276 = vmatpush1.bf16.msra.mxu0 0
      %277 = vmatprep.subr.bf16.mxu0 0
      %278 = vmatpush1.bf16.msra.mxu0 0
      %279 = vmatprep.subr.bf16.mxu0 0
      %280 = vmatpush1.bf16.msra.mxu0 0
      %281 = vmatprep.subr.bf16.mxu0 0
      %282 = vmatpush1.bf16.msra.mxu0 0
      %283 = vmatprep.subr.bf16.mxu0 0
      %284 = vmatpush1.bf16.msra.mxu0 0
      %285 = vmatprep.subr.bf16.mxu0 0
      %286 = vmatpush1.bf16.msra.mxu0 0
      %287 = vmatprep.subr.bf16.mxu0 0
      %288 = vmatpush1.bf16.msra.mxu0 0
      %289 = vmatprep.subr.bf16.mxu0 0
      %290 = vmatpush1.bf16.msra.mxu0 0
      %291 = vmatprep.subr.bf16.mxu0 0
      %292 = vmatpush1.bf16.msra.mxu0 0
      %293 = vmatprep.subr.bf16.mxu0 0
      %294 = vmatpush1.bf16.msra.mxu0 0
      %295 = vmatprep.subr.bf16.mxu0 0
      %296 = vmatpush1.bf16.msra.mxu0 0
      %297 = vmatprep.subr.bf16.mxu0 0
      %298 = vmatpush1.bf16.msra.mxu0 0
      %299 = vmatprep.mubr.bf16.mxu0 0
      %300 = vmatmul.mubr.bf16.gmra.mrb[0].mxu0 %v265
      %v301 = vpop.f32.mrb[0].mxu0
      %v302 = vadd.f32 0.0, %v301
      %v303 = vpop.f32.mrb[0].mxu0
      %v304 = vadd.f32 0.0, %v303
      %v305 = vpop.f32.mrb[0].mxu0
      %v306 = vpop.f32.mrb[0].mxu0
      %307 = vdwg.mxu0
      %s308 = sshra.s32 %s219, 3
      %s309 = sand.u32 %s219, 7
      %s310 = smul.u32 %s308, 2
      %s311 = smul.addr %s310, 8
      %s312 = scalar_lea.vmem [#allocation4], %s311
      %v313 = vld [vmem:[%s312] sm:$0xff]
      %v314 = vadd.f32 %v313, %v302
      %s315 = sshra.s32 %s221, 3
      %s316 = sand.u32 %s221, 7
      %s317 = smul.u32 %s315, 2
      %s318 = smul.addr %s317, 8
      %s319 = scalar_lea.vmem [#allocation4], %s318
      %v320 = vld [vmem:[%s319 + $0x8] sm:$0xff]
      %v321 = vadd.f32 %v320, %v304
      %v322 = vld [vmem:[#allocation3] sm:$0xff]
      %v323 = vxor.u32 %v314, 2147483648
      %v324 = vmul.f32 %v323, 1.442695
      %v325 = vpow.pop %v324
      %v326 = vadd.f32 %v325, 1.0
      %v327 = vrcp.pop %v326
      %v328 = vmul.f32 1.0, %v327
      %v329 = vtanh.pop %v314
      %331 = vrot.lane.b32.xlu0 %v322, 32
      %v332 = vpop.permute.xlu0 %331
      %v334 = vmul.f32 %v328, %v332
      %336 = vrot.lane.b32.xlu0 %v329, 64
      %v337 = vpop.permute.xlu0 %336
      %v339 = vmul.f32 %v328, %v337
      %341 = vrot.lane.b32.xlu0 %v339, 32
      %v342 = vpop.permute.xlu0 %341
      %v344 = vadd.f32 %v334, %v342
      %v345 = vtanh.pop %v344
      %347 = vrot.lane.b32.xlu0 %v345, 64
      %v348 = vpop.permute.xlu0 %347
      %v350 = vmul.f32 %v328, %v348
      %v351 = vxor.u32 %v321, 2147483648
      %v352 = vmul.f32 %v351, 1.442695
      %v353 = vpow.pop %v352
      %v354 = vadd.f32 %v353, 1.0
      %v355 = vrcp.pop %v354
      %v356 = vmul.f32 1.0, %v355
      %v357 = vtanh.pop %v321
      %v358 = vmul.f32 %v356, %v322
      %360 = vrot.lane.b32.xlu0 %v357, 64
      %v361 = vpop.permute.xlu0 %360
      %v363 = vmul.f32 %v356, %v361
      %365 = vrot.lane.b32.xlu0 %v363, 32
      %v366 = vpop.permute.xlu0 %365
      %v368 = vadd.f32 %v358, %v366
      %v369 = vtanh.pop %v368
      %371 = vrot.lane.b32.xlu0 %v369, 64
      %v372 = vpop.permute.xlu0 %371
      %v374 = vmul.f32 %v356, %v372
      %376 = vrot.lane.b32.xlu0 %v350, 32
      %v377 = vpop.permute.xlu0 %376
      %380 = vrot.lane.b32.xlu0 %v374, 64
      %v381 = vpop.permute.xlu0 %380
      %vm383 = vcmask 261120
      %v384 = vsel %vm383, %v377, %v381
      %385 = vst.msk [vmem:[#allocation2] sm:$0xff] %vm101, %v384
      %387 = vrot.lane.b32.xlu0 %v344, 96
      %v388 = vpop.permute.xlu0 %387
      %v390 = vsel %vm383, %v388, %v368
      %391 = vst.msk [vmem:[#allocation3] sm:$0xff] %vm101, %v390
      %s392 = scalar_lea.vmem [#allocation6], %s219
      %393 = vst.msk [vmem:[%s392] sm:$0xff] %vm383, %v377
      %s394 = scalar_lea.vmem [#allocation6], %s221
      %vm395 = vcmask 523520
      %396 = vst.msk [vmem:[%s394] sm:$0xff] %vm395, %v381
    $region30: #{lstm_forward.3} parent=1 // loop_footer
      %s218 = sadd.s32 1, %s214
    $region31: #{lstm_forward.3} parent=1 // loop_footer_branch
      %213 = sbr.rel target = $region27
    $region32: #{lstm_forward.3} parent=1 // loop_exit
      _
    %v397 = vld [vmem:[#allocation2] sm:$0xff]
    %v398 = vld [vmem:[%s4] sm:$0xff]
    %v399 = vld [vmem:[%s4 + $0x8] sm:$0xff]
    %v400 = vld [vmem:[%s4 + $0x10] sm:$0xff]
    %v401 = vld [vmem:[%s4 + $0x18] sm:$0xff]
    %v402 = vld [vmem:[#allocation5] sm:$0x1]
    %v404 = vlaneseq
    %v405 = vshrl.u32 %v404, 7
    %v406 = vsub.s32 0, %v405
    %v407 = vrot.slane %v402, %v406
    %410 = vrot.lane.b32.xlu0 %v397, 96
    %v411 = vpop.permute.xlu0 %410
    %vm412 = vcmask 261120
    %v413 = vsel %vm412, %v411, 0
    %415 = vmatprep.subr.mxu0 0.0
    %416 = vmatpush1.msra.mxu0 %v398
    %417 = vmatprep.subr.mxu0 0.0
    %418 = vmatpush1.msra.mxu0 %v399
    %419 = vmatprep.subr.mxu0 0.0
    %420 = vmatpush1.msra.mxu0 %v400
    %421 = vmatprep.subr.mxu0 0.0
    %422 = vmatpush1.msra.mxu0 %v401
    %423 = vmatprep.subr.mxu0 0.0
    %424 = vmatpush1.msra.mxu0 0.0
    %425 = vmatprep.subr.mxu0 0.0
    %426 = vmatpush1.msra.mxu0 0.0
    %427 = vmatprep.subr.mxu0 0.0
    %428 = vmatpush1.msra.mxu0 0.0
    %429 = vmatprep.subr.mxu0 0.0
    %430 = vmatpush1.msra.mxu0 0.0
    %431 = vmatprep.subr.mxu0 0.0
    %432 = vmatpush1.msra.mxu0 0.0
    %433 = vmatprep.subr.mxu0 0.0
    %434 = vmatpush1.msra.mxu0 0.0
    %435 = vmatprep.subr.mxu0 0.0
    %436 = vmatpush1.msra.mxu0 0.0
    %437 = vmatprep.subr.mxu0 0.0
    %438 = vmatpush1.msra.mxu0 0.0
    %439 = vmatprep.subr.mxu0 0.0
    %440 = vmatpush1.msra.mxu0 0.0
    %441 = vmatprep.subr.mxu0 0.0
    %442 = vmatpush1.msra.mxu0 0.0
    %443 = vmatprep.subr.mxu0 0.0
    %444 = vmatpush1.msra.mxu0 0.0
    %445 = vmatprep.subr.mxu0 0.0
    %446 = vmatpush1.msra.mxu0 0.0
    %447 = vmatprep.subr.mxu0 0.0
    %448 = vmatpush1.msra.mxu0 0.0
    %449 = vmatprep.subr.mxu0 0.0
    %450 = vmatpush1.msra.mxu0 0.0
    %451 = vmatprep.subr.mxu0 0.0
    %452 = vmatpush1.msra.mxu0 0.0
    %453 = vmatprep.subr.mxu0 0.0
    %454 = vmatpush1.msra.mxu0 0.0
    %455 = vmatprep.subr.mxu0 0.0
    %456 = vmatpush1.msra.mxu0 0.0
    %457 = vmatprep.subr.mxu0 0.0
    %458 = vmatpush1.msra.mxu0 0.0
    %459 = vmatprep.subr.mxu0 0.0
    %460 = vmatpush1.msra.mxu0 0.0
    %461 = vmatprep.subr.mxu0 0.0
    %462 = vmatpush1.msra.mxu0 0.0
    %463 = vmatprep.subr.mxu0 0.0
    %464 = vmatpush1.msra.mxu0 0.0
    %465 = vmatprep.subr.mxu0 0.0
    %466 = vmatpush1.msra.mxu0 0.0
    %467 = vmatprep.subr.mxu0 0.0
    %468 = vmatpush1.msra.mxu0 0.0
    %469 = vmatprep.subr.mxu0 0.0
    %470 = vmatpush1.msra.mxu0 0.0
    %471 = vmatprep.subr.mxu0 0.0
    %472 = vmatpush1.msra.mxu0 0.0
    %473 = vmatprep.subr.mxu0 0.0
    %474 = vmatpush1.msra.mxu0 0.0
    %475 = vmatprep.subr.mxu0 0.0
    %476 = vmatpush1.msra.mxu0 0.0
    %477 = vmatprep.subr.mxu0 0.0
    %478 = vmatpush1.msra.mxu0 0.0
    %479 = vmatprep.mubr.f32.mxu0 0.0
    %480 = vmatmul.mubr.f32.gmra.mrb[0].mxu0 %v413
    %v481 = vpop.f32.mrb[0].mxu0
    %v482 = vadd.f32 %v407, %v481
    %v483 = vpop.f32.mrb[0].mxu0
    %484 = vdwg.mxu0
    %v485 = vxor.u32 %v482, 2147483648
    %v486 = vmul.f32 %v485, 1.442695
    %v487 = vpow.pop %v486
    %v488 = vadd.f32 %v487, 1.0
    %v489 = vrcp.pop %v488
    %v490 = vmul.f32 1.0, %v489
    %vm491 = vcmask 7168
    %492 = vst.msk [vmem:[%s7] sm:$0xff] %vm491, %v490
    // Predicated region
    $region33: #{lstm_forward.3} parent=1 // pred_check
      _
    $region34: #{lstm_forward.3} parent=1 // pred_check_branch
      %494 = sbr.rel (0) target = $region36
    $region35: #{lstm_forward.3} parent=1 // pred_region
      %s496 = ssub.s32 1024, 1024
      %497 = vsyncadd [#allocation7], %s496
      %s498 = sshll.u32 [#allocation6], 4
      %s499 = int_to_ptr.vmem [resolvable:$true] %s498
      %504 = dma.vmem_to_hbm [thread:$0]  %s499, 1024, %s6, [#allocation7], 128, 128, 8
    $region36: #{lstm_forward.3} parent=1 // pred_fallthru
      _
    // Predicated region
    $region37: #{lstm_forward.3} parent=1 // pred_check
      _
    $region38: #{lstm_forward.3} parent=1 // pred_check_branch
      %506 = sbr.rel (0) target = $region40
    $region39: #{lstm_forward.3} parent=1 // pred_region
      _
    $region40: #{lstm_forward.3} parent=1 // pred_fallthru
      _
    // Predicated region
    $region41: #{lstm_forward.3} parent=1 // pred_check
      _
    $region42: #{lstm_forward.3} parent=1 // pred_check_branch
      %508 = sbr.rel (0) target = $region44
    $region43: #{lstm_forward.3} parent=1 // pred_region
      %509 = dma.done [#allocation7], 1024
    $region44: #{lstm_forward.3} parent=1 // pred_fallthru
      _
    // Predicated region
    $region45: #{lstm_forward.3} parent=1 // pred_check
      _
    $region46: #{lstm_forward.3} parent=1 // pred_check_branch
      %511 = sbr.rel (0) target = $region48
    $region47: #{lstm_forward.3} parent=1 // pred_region
      _
    $region48: #{lstm_forward.3} parent=1 // pred_fallthru
      _
    %512 = vsyncpa [#allocation7], 1

</llo_original>
